<compile_context>
chip_gen: v5e
topology: v5e:2x2
jax: 0.10.0
libtpu: 0.0.40
codegen_flags: <defaults>
</compile_context>

<pallas_src>
import functools

import jax
import jax.numpy as jnp
from jax.experimental import pallas as pl
from jax.experimental.pallas import tpu as pltpu

EPS = 1e-5


# --------------------------------------------------------------------------
# Kernels
# --------------------------------------------------------------------------

def _bn_mod_kernel(x_ref, scale_ref, shift_ref, o_ref, *, inv_count):
    """Single-pass path: per-channel-tile stats + fused modulated normalize.

    x:     (B, Ct, Lpad)   I/O dtype (never upcast as a full tile)
    scale: (B, Ct, 1)      f32
    shift: (B, Ct, 1)      f32
    out  = a * x + b   with  a = scale * rsqrt(var+eps),  b = shift - a*mean
    """
    x = x_ref[...]                                              # I/O dtype
    # One-pass stats, f32 accumulation only (padded zero columns contribute
    # nothing to the sums; inv_count uses the true B*L).
    s1 = jnp.sum(x, axis=(0, 2), keepdims=True, dtype=jnp.float32)      # (1,Ct,1)
    s2 = jnp.sum(x * x, axis=(0, 2), keepdims=True, dtype=jnp.float32)  # (1,Ct,1)
    mean = s1 * inv_count
    var = jnp.maximum(s2 * inv_count - mean * mean, 0.0)
    inv_std = jax.lax.rsqrt(var + EPS)                                  # (1,Ct,1)

    a = scale_ref[...] * inv_std                                        # (B,Ct,1) f32
    b = shift_ref[...] - a * mean                                       # (B,Ct,1) f32
    # Final FMA in the I/O dtype (bf16 VALU on v6e/v7x; f32 identity here).
    o_ref[...] = (a.astype(x.dtype) * x + b.astype(x.dtype)).astype(o_ref.dtype)


def _stats_kernel(x_ref, sum_ref, sq_ref):
    """Fallback phase 1: accumulate per-channel sum / sum-of-squares.

    Grid = (nC, nL); L axis is "arbitrary" and the (Ct, 1) output blocks stay
    resident across it (same block index), acting as f32 accumulators.
    """
    @pl.when(pl.program_id(1) == 0)
    def _():
        sum_ref[...] = jnp.zeros_like(sum_ref)
        sq_ref[...] = jnp.zeros_like(sq_ref)

    x = x_ref[...]                                              # (B, Ct, Lt)
    sum_ref[...] += jnp.sum(x, axis=(0, 2), keepdims=True, dtype=jnp.float32)[0]
    sq_ref[...] += jnp.sum(x * x, axis=(0, 2), keepdims=True, dtype=jnp.float32)[0]


def _apply_kernel(x_ref, a_ref, b_ref, o_ref):
    """Fallback phase 2: lane-dense fused FMA, out = a*x + b."""
    x = x_ref[...]
    a = a_ref[...].astype(x.dtype)
    b = b_ref[...].astype(x.dtype)
    o_ref[...] = (a * x + b).astype(o_ref.dtype)


# --------------------------------------------------------------------------
# Generation-aware tiling helpers
# --------------------------------------------------------------------------

def _tpu_generation():
    try:
        kind = jax.devices()[0].device_kind.lower()
    except Exception:
        return "unknown"
    if "v7" in kind:
        return "v7x"
    if "v6" in kind:
        return "v6e"
    if "v5p" in kind:
        return "v5p"
    if "v5" in kind:
        return "v5e"
    if "v4" in kind:
        return "v4"
    return "unknown"


def _vmem_params(gen):
    """(vmem_limit_bytes to request, per-buffer tile budget).

    Budget ~= limit/8 so 2x in + 2x out double-buffers plus f32 temporaries
    fit with headroom.  v7x has only 64 MiB physical VMEM -> lower cap."""
    if gen == "v7x":
        return 40 << 20, 5 << 20
    if gen in ("v6e", "v5e", "v5p", "v4"):
        return 64 << 20, 8 << 20
    return None, 1 << 20            # older / unknown chip: keep compiler defaults


def _choose_channel_tile(B, C, Lpad, itemsize, budget_bytes, prefer_multi_step):
    """Largest legal channel tile whose (B, Ct, Lpad) block fits the budget.
    Returns None if even the smallest legal tile does not fit -> fallback."""
    per_ch = B * Lpad * itemsize
    cands = [ct for ct in range(1, C + 1)
             if C % ct == 0 and (ct % 8 == 0 or ct == C)]
    fitting = [ct for ct in cands if ct * per_ch <= budget_bytes]
    if not fitting:
        return None
    if prefer_multi_step:  # v7x: keep >= 2 (ideally even) steps for both TCs
        even = [ct for ct in fitting if (C // ct) >= 2 and (C // ct) % 2 == 0]
        multi = [ct for ct in fitting if (C // ct) >= 2]
        if even:
            return max(even)
        if multi:
            return max(multi)
    return max(fitting)


def _choose_fallback_tiles(B, C, Lpad, itemsize, budget_bytes):
    """(Ct, Lt) for the two-pass path; Lt is a lane-dense multiple of 128."""
    c_cands = [ct for ct in range(1, C + 1)
               if C % ct == 0 and (ct % 8 == 0 or ct == C)]
    l_cands = [lt for lt in range(128, Lpad + 1, 128) if Lpad % lt == 0]
    if not l_cands:
        l_cands = [Lpad]
    best = (min(c_cands), min(l_cands))     # best effort even if over budget
    best_elems = 0
    for ct in c_cands:
        for lt in l_cands:
            if B * ct * lt * itemsize <= budget_bytes and ct * lt > best_elems:
                best, best_elems = (ct, lt), ct * lt
    return best


# --------------------------------------------------------------------------
# pallas_call wrappers
# --------------------------------------------------------------------------

def _single_pass(x_p, scale3, shift3, Ct, L_valid, gen, vmem_limit):
    B, C, Lpad = x_p.shape
    n_steps = C // Ct
    itemsize = jnp.dtype(x_p.dtype).itemsize
    block_bytes = B * Ct * Lpad * itemsize

    x_index = lambda c: (0, c, 0)
    if gen == "v5e" and n_steps >= 3 and block_bytes < (512 << 10):
        # v5e has the lowest HBM BW; deepen the x pipeline when tiles are small.
        x_spec = pl.BlockSpec((B, Ct, Lpad), x_index, pipeline_mode=pl.Buffered(3))
    else:
        x_spec = pl.BlockSpec((B, Ct, Lpad), x_index)

    cp = dict(dimension_semantics=("parallel",))
    if vmem_limit is not None:
        cp["vmem_limit_bytes"] = int(vmem_limit)

    cost = pl.CostEstimate(
        flops=5 * B * C * Lpad + 4 * B * C,
        transcendentals=C,                                   # rsqrt per channel
        bytes_accessed=2 * B * C * Lpad * itemsize + 2 * B * C * 4,
    )

    kernel = functools.partial(_bn_mod_kernel, inv_count=1.0 / (B * L_valid))
    return pl.pallas_call(
        kernel,
        out_shape=jax.ShapeDtypeStruct((B, C, Lpad), x_p.dtype),
        grid=(n_steps,),
        in_specs=[x_spec,
                  pl.BlockSpec((B, Ct, 1), lambda c: (0, c, 0)),
                  pl.BlockSpec((B, Ct, 1), lambda c: (0, c, 0))],
        out_specs=pl.BlockSpec((B, Ct, Lpad), lambda c: (0, c, 0)),
        compiler_params=pltpu.CompilerParams(**cp),
        cost_estimate=cost,
    )(x_p, scale3, shift3)


def _two_pass(x_p, scale3, shift3, Ct, Lt, L_valid, vmem_limit):
    """(C, L)-tiled fallback for large B*L: stats sweep + apply sweep."""
    B, C, Lpad = x_p.shape
    nC, nL = C // Ct, Lpad // Lt
    extra = {"vmem_limit_bytes": int(vmem_limit)} if vmem_limit is not None else {}

    sum_x, sum_xx = pl.pallas_call(
        _stats_kernel,
        out_shape=(jax.ShapeDtypeStruct((C, 1), jnp.float32),
                   jax.ShapeDtypeStruct((C, 1), jnp.float32)),
        grid=(nC, nL),
        in_specs=[pl.BlockSpec((B, Ct, Lt), lambda c, l: (0, c, l))],
        out_specs=(pl.BlockSpec((Ct, 1), lambda c, l: (c, 0)),
                   pl.BlockSpec((Ct, 1), lambda c, l: (c, 0))),
        compiler_params=pltpu.CompilerParams(
            dimension_semantics=("parallel", "arbitrary"), **extra),
    )(x_p)

    count = float(B * L_valid)
    mean = sum_x / count                                      # (C, 1) f32
    var = jnp.maximum(sum_xx / count - mean * mean, 0.0)
    inv_std = jax.lax.rsqrt(var + EPS)
    a = scale3 * inv_std[None, :, :]                          # (B, C, 1) f32
    b = shift3 - a * mean[None, :, :]

    return pl.pallas_call(
        _apply_kernel,
        out_shape=jax.ShapeDtypeStruct((B, C, Lpad), x_p.dtype),
        grid=(nC, nL),
        in_specs=[pl.BlockSpec((B, Ct, Lt), lambda c, l: (0, c, l)),
                  pl.BlockSpec((B, Ct, 1), lambda c, l: (0, c, 0)),
                  pl.BlockSpec((B, Ct, 1), lambda c, l: (0, c, 0))],
        out_specs=pl.BlockSpec((B, Ct, Lt), lambda c, l: (0, c, l)),
        compiler_params=pltpu.CompilerParams(
            dimension_semantics=("parallel", "parallel"), **extra),
    )(x_p, a, b)


def cond_batch_norm_1d(x, z, s, w_scale, b_scale, w_shift, b_shift,
                       *, budget_bytes=None, force_fallback=False):
    """x: (B, C, L); z: (B, Zc); s: (B, Sc); w_scale: (C, Zc); w_shift: (C, Sc)."""
    B, C, L = x.shape
    gen = _tpu_generation()
    vmem_limit, default_budget = _vmem_params(gen)
    if budget_bytes is None:
        budget_bytes = default_budget

    # Modulation Linears hoisted to tiny XLA matmuls (2*B*C*(Zc+Sc) flops,
    # negligible vs streaming x); the kernel consumes (B, C, 1) scale/shift.
    f32 = jnp.float32
    scale = jnp.dot(z.astype(f32), w_scale.astype(f32).T) + b_scale.astype(f32)
    shift = jnp.dot(s.astype(f32), w_shift.astype(f32).T) + b_shift.astype(f32)
    scale3 = scale[:, :, None]                                 # (B, C, 1) f32
    shift3 = shift[:, :, None]                                 # (B, C, 1) f32

    # Pad L to a lane-dense multiple of 128 (unmasked vst).  Padded zeros do
    # not affect the sums; the padded output columns are sliced off below.
    Lpad = ((L + 127) // 128) * 128
    x_p = x if Lpad == L else jnp.pad(x, ((0, 0), (0, 0), (0, Lpad - L)))

    itemsize = jnp.dtype(x.dtype).itemsize
    Ct = None
    if not force_fallback:
        Ct = _choose_channel_tile(B, C, Lpad, itemsize, budget_bytes,
                                  prefer_multi_step=(gen == "v7x"))
    if Ct is not None:
        out_p = _single_pass(x_p, scale3, shift3, Ct, L, gen, vmem_limit)
    else:
        Ct, Lt = _choose_fallback_tiles(B, C, Lpad, itemsize, budget_bytes)
        out_p = _two_pass(x_p, scale3, shift3, Ct, Lt, L, vmem_limit)

    return out_p if Lpad == L else out_p[:, :, :L]


# --------------------------------------------------------------------------
# Parameter prep + pure-JAX reference
# --------------------------------------------------------------------------

def _spectral_normalize(w, iters=50):
    """Divide w (out, in) by its largest singular value (power iteration).
    NOTE: torch spectral_norm does 1 iteration/forward with a persistent u;
    this is a fully converged estimate (small, benign numeric divergence)."""
    u = jnp.ones((w.shape[0],), jnp.float32)
    u = u / jnp.linalg.norm(u)
    v = None
    for _ in range(iters):
        v = w.T @ u
        v = v / (jnp.linalg.norm(v) + 1e-12)
        u = w @ v
        u = u / (jnp.linalg.norm(u) + 1e-12)
    sigma = u @ (w @ v)
    return w / sigma


def _reference(x, z, s, w_scale, b_scale, w_shift, b_shift):
    mean = jnp.mean(x, axis=(0, 2), keepdims=True)
    var = jnp.mean((x - mean) ** 2, axis=(0, 2), keepdims=True)
    xhat = (x - mean) / jnp.sqrt(var + EPS)
    scale = z @ w_scale.T + b_scale
    shift = s @ w_shift.T + b_shift
    return scale[:, :, None] * xhat + shift[:, :, None]


def _make_params(key, C, Zc, Sc):
    kwz, kws = jax.random.split(key)
    w_scale = _spectral_normalize(1.0 + 0.02 * jax.random.normal(kwz, (C, Zc), jnp.float32))
    w_shift = _spectral_normalize(1.0 + 0.02 * jax.random.normal(kws, (C, Sc), jnp.float32))
    return w_scale, jnp.zeros((C,), jnp.float32), w_shift, jnp.zeros((C,), jnp.float32)


if __name__ == "__main__":
    # ---- Test 1: small shape (exercises L-padding + single-pass path) ----
    B, C, L = 2, 8, 16          # num_features = 8
    Zc, Sc = 32, 32             # z_channels, s_channels
    key = jax.random.PRNGKey(0)
    kx, kz, ks, kp = jax.random.split(key, 4)
    x = jax.random.normal(kx, (B, C, L), jnp.float32)
    z = jax.random.normal(kz, (B, Zc), jnp.float32)
    s = jax.random.normal(ks, (B, Sc), jnp.float32)
    w_scale, b_scale, w_shift, b_shift = _make_params(kp, C, Zc, Sc)

    out = jax.block_until_ready(
        cond_batch_norm_1d(x, z, s, w_scale, b_scale, w_shift, b_shift))
    ref = _reference(x, z, s, w_scale, b_scale, w_shift, b_shift)
    assert out.shape == (B, C, L)
    assert jnp.allclose(out, ref, atol=1e-4, rtol=1e-4), "single-pass mismatch"

    # ---- Test 2: longer sequence; check both the auto path and the forced
    #      (C, L)-tiled two-pass fallback (tiny budget -> Lt=128, 3 L-tiles) ----
    B2, C2, L2 = 2, 16, 384
    key2 = jax.random.PRNGKey(1)
    kx2, kz2, ks2, kp2 = jax.random.split(key2, 4)
    x2 = jax.random.normal(kx2, (B2, C2, L2), jnp.float32)
    z2 = jax.random.normal(kz2, (B2, Zc), jnp.float32)
    s2 = jax.random.normal(ks2, (B2, Sc), jnp.float32)
    w_scale2, b_scale2, w_shift2, b_shift2 = _make_params(kp2, C2, Zc, Sc)
    ref2 = _reference(x2, z2, s2, w_scale2, b_scale2, w_shift2, b_shift2)

    out2 = jax.block_until_ready(
        cond_batch_norm_1d(x2, z2, s2, w_scale2, b_scale2, w_shift2, b_shift2))
    assert jnp.allclose(out2, ref2, atol=1e-4, rtol=1e-4), "single-pass (big) mismatch"

    out2_fb = jax.block_until_ready(
        cond_batch_norm_1d(x2, z2, s2, w_scale2, b_scale2, w_shift2, b_shift2,
                           force_fallback=True, budget_bytes=16 * 1024))
    assert jnp.allclose(out2_fb, ref2, atol=1e-4, rtol=1e-4), "fallback mismatch"

    print("KERNEL_OK")
</pallas_src>

<mosaic_0001>
module attributes {stable_mosaic.version = 11 : i64} {
  func.func @_bn_mod_kernel(%arg0: i32, %arg1: memref<2x8x128xf32, #tpu.memory_space<vmem>>, %arg2: memref<2x8x1xf32, #tpu.memory_space<vmem>>, %arg3: memref<2x8x1xf32, #tpu.memory_space<vmem>>, %arg4: memref<2x8x128xf32, #tpu.memory_space<vmem>>) attributes {dimension_semantics = [#tpu.dimension_semantics<parallel>], iteration_bounds = array<i64: 1>, scalar_prefetch = 0 : i64, scratch_operands = 0 : i64, tpu.core_type = #tpu.core_type<tc>, window_params = [{transform_indices = @transform_0, window_bounds = array<i64: 2, 8, 128>}, {transform_indices = @transform_1, window_bounds = array<i64: 2, 8, 1>}, {transform_indices = @transform_2, window_bounds = array<i64: 2, 8, 1>}, {transform_indices = @transform_3, window_bounds = array<i64: 2, 8, 128>}]} {
    %c0 = arith.constant 0 : index
    %c0_0 = arith.constant 0 : index
    %c0_1 = arith.constant 0 : index
    %0 = vector.load %arg1[%c0, %c0_0, %c0_1] : memref<2x8x128xf32, #tpu.memory_space<vmem>>, vector<2x8x128xf32>
    %cst = arith.constant dense<0.000000e+00> : vector<8xf32>
    %1 = vector.multi_reduction <add>, %0, %cst [0, 2] : vector<2x8x128xf32> to vector<8xf32>
    %2 = vector.shape_cast %1 : vector<8xf32> to vector<1x8x1xf32>
    %3 = arith.mulf %0, %0 : vector<2x8x128xf32>
    %cst_2 = arith.constant dense<0.000000e+00> : vector<8xf32>
    %4 = vector.multi_reduction <add>, %3, %cst_2 [0, 2] : vector<2x8x128xf32> to vector<8xf32>
    %5 = vector.shape_cast %4 : vector<8xf32> to vector<1x8x1xf32>
    %cst_3 = arith.constant 3.125000e-02 : f32
    %6 = vector.broadcast %cst_3 : f32 to vector<1x8x1xf32>
    %7 = arith.mulf %2, %6 : vector<1x8x1xf32>
    %cst_4 = arith.constant 3.125000e-02 : f32
    %8 = vector.broadcast %cst_4 : f32 to vector<1x8x1xf32>
    %9 = arith.mulf %5, %8 : vector<1x8x1xf32>
    %10 = arith.mulf %7, %7 : vector<1x8x1xf32>
    %11 = arith.subf %9, %10 : vector<1x8x1xf32>
    %cst_5 = arith.constant 0.000000e+00 : f32
    %12 = vector.broadcast %cst_5 : f32 to vector<1x8x1xf32>
    %13 = arith.maximumf %11, %12 : vector<1x8x1xf32>
    %cst_6 = arith.constant 9.99999974E-6 : f32
    %14 = vector.broadcast %cst_6 : f32 to vector<1x8x1xf32>
    %15 = arith.addf %13, %14 : vector<1x8x1xf32>
    %16 = math.rsqrt %15 : vector<1x8x1xf32>
    %c0_7 = arith.constant 0 : index
    %c0_8 = arith.constant 0 : index
    %c0_9 = arith.constant 0 : index
    %17 = vector.load %arg2[%c0_7, %c0_8, %c0_9] : memref<2x8x1xf32, #tpu.memory_space<vmem>>, vector<2x8x1xf32>
    %18 = vector.broadcast %16 : vector<1x8x1xf32> to vector<2x8x1xf32>
    %19 = arith.mulf %17, %18 : vector<2x8x1xf32>
    %c0_10 = arith.constant 0 : index
    %c0_11 = arith.constant 0 : index
    %c0_12 = arith.constant 0 : index
    %20 = vector.load %arg3[%c0_10, %c0_11, %c0_12] : memref<2x8x1xf32, #tpu.memory_space<vmem>>, vector<2x8x1xf32>
    %21 = vector.broadcast %7 : vector<1x8x1xf32> to vector<2x8x1xf32>
    %22 = arith.mulf %19, %21 : vector<2x8x1xf32>
    %23 = arith.subf %20, %22 : vector<2x8x1xf32>
    %24 = vector.broadcast %19 : vector<2x8x1xf32> to vector<2x8x128xf32>
    %25 = arith.mulf %24, %0 : vector<2x8x128xf32>
    %26 = vector.broadcast %23 : vector<2x8x1xf32> to vector<2x8x128xf32>
    %27 = arith.addf %25, %26 : vector<2x8x128xf32>
    %c0_13 = arith.constant 0 : index
    %c0_14 = arith.constant 0 : index
    %c0_15 = arith.constant 0 : index
    %28 = vector.load %arg4[%c0_13, %c0_14, %c0_15] : memref<2x8x128xf32, #tpu.memory_space<vmem>>, vector<2x8x128xf32>
    tpu.vector_store %arg4[%c0_13, %c0_14, %c0_15], %27 {strides = array<i32>} : memref<2x8x128xf32, #tpu.memory_space<vmem>>, vector<2x8x128xf32>,
    return
  }
  func.func @transform_0(%arg0: i32) -> (i32, i32, i32) {
    %c0_i32 = arith.constant 0 : i32
    %c0_i32_0 = arith.constant 0 : i32
    %c0_i32_1 = arith.constant 0 : i32
    return %c0_i32, %arg0, %c0_i32_0 : i32, i32, i32
  }
  func.func @transform_1(%arg0: i32) -> (i32, i32, i32) {
    %c0_i32 = arith.constant 0 : i32
    %c0_i32_0 = arith.constant 0 : i32
    %c0_i32_1 = arith.constant 0 : i32
    return %c0_i32, %arg0, %c0_i32_0 : i32, i32, i32
  }
  func.func @transform_2(%arg0: i32) -> (i32, i32, i32) {
    %c0_i32 = arith.constant 0 : i32
    %c0_i32_0 = arith.constant 0 : i32
    %c0_i32_1 = arith.constant 0 : i32
    return %c0_i32, %arg0, %c0_i32_0 : i32, i32, i32
  }
  func.func @transform_3(%arg0: i32) -> (i32, i32, i32) {
    %c0_i32 = arith.constant 0 : i32
    %c0_i32_0 = arith.constant 0 : i32
    %c0_i32_1 = arith.constant 0 : i32
    return %c0_i32, %arg0, %c0_i32_0 : i32, i32, i32
  }
}

</mosaic_0001>

<llo_original>
// kernel: tpu_custom_call.1
$region0: #{tpu_custom_call.1}
  #allocation0 [shape = 'u32[]', space=smem, size = 0x4, offset = 0x4, fixed_abs, tag = 'smem constant byte address 0x4 - core index']
  #allocation1 [shape = 'u32[72,128]{1,0:T(1,128)}', space=vmem, size = 0x9000, scoped, tag = 'internal scratch']
  %s0 = inlined_call_operand.vmem [shape: f32[2,8,128], index: 0, kind: input, shape index: {}]
  %s1 = inlined_call_operand.vmem [shape: f32[2,8,1], index: 1, kind: input, shape index: {}]
  %s2 = inlined_call_operand.vmem [shape: f32[2,8,1], index: 2, kind: input, shape index: {}]
  %s3 = inlined_call_operand.hbm [shape: f32[2,8,128], index: 3, kind: output, shape index: {}]
  %s4 = sld [smem:[#allocation0]]
  $region22: #{tpu_custom_call.1} parent=0
    _
  %s6 = ssub.s32 1, %s4
  %s7 = scalar_select 0, %s6, %s4
  $region1: #{tpu_custom_call.1} parent=0
    #allocation2 [shape = 'u8[8192]{0}', space=vmem, size = 0x2000, scoped, tag = 'output window, operand 0, single buffered']
    #allocation3 [shape = 's32[1]{0}', space=sflag, size = 0x4, scoped, tag = 'scoped memory for tpu_custom_call.1']
    %8 = vsyncpa [#allocation3], 0
    // Predicated region
    $region2: #{tpu_custom_call.1} parent=1 // pred_check
      _
    $region3: #{tpu_custom_call.1} parent=1 // pred_check_branch
      %10 = sbr.rel (0) target = $region5
    $region4: #{tpu_custom_call.1} parent=1 // pred_region
      _
    $region5: #{tpu_custom_call.1} parent=1 // pred_fallthru
      _
    // Predicated region
    $region6: #{tpu_custom_call.1} parent=1 // pred_check
      _
    $region7: #{tpu_custom_call.1} parent=1 // pred_check_branch
      %12 = sbr.rel (0) target = $region9
    $region8: #{tpu_custom_call.1} parent=1 // pred_region
      _
    $region9: #{tpu_custom_call.1} parent=1 // pred_fallthru
      _
    // Predicated region
    $region10: #{tpu_custom_call.1} parent=1 // pred_check
      _
    $region11: #{tpu_custom_call.1} parent=1 // pred_check_branch
      %14 = sbr.rel (0) target = $region13
    $region12: #{tpu_custom_call.1} parent=1 // pred_region
      _
    $region13: #{tpu_custom_call.1} parent=1 // pred_fallthru
      _
    %v15 = vld [vmem:[%s0] sm:$0xff]
    %v16 = vld [vmem:[%s0 + $0x8] sm:$0xff]
    %v17 = vadd.f32 %v15, %v16
    %18 = vadd.xlane.f32.xlu0 %v17
    %v19 = vpop.xlane.xlu0 %18
    %v20 = vmul.f32 %v15, %v15
    %v21 = vmul.f32 %v16, %v16
    %v22 = vadd.f32 %v20, %v21
    %23 = vadd.xlane.f32.xlu0 %v22
    %v24 = vpop.xlane.xlu0 %23
    %v25 = vmul.f32 %v19, 0.03125
    %v26 = vmul.f32 %v24, 0.03125
    %v27 = vmul.f32 %v25, %v25
    %v28 = vsub.f32 %v26, %v27
    %v29 = vmax.f32 %v28, 0.0
    %v30 = vadd.f32 %v29, 1e-05
    %v31 = vrsqrt.pop %v30
    %v32 = vmul.f32 %v31, %v30
    %v33 = vmul.f32 %v32, %v31
    %v34 = vmul.f32 0.5, %v33
    %v35 = vsub.f32 1.5, %v34
    %v36 = vmul.f32 %v31, %v35
    %vm37 = vweird.f32 %v30
    %vm38 = vweird.f32 %v31
    %vm39 = vmor %vm37, %vm38
    %v40 = vsel %vm39, %v31, %v36
    %v41 = vld [vmem:[%s1] sm:$0xff]
    %v42 = vld [vmem:[%s1 + $0x8] sm:$0xff]
    %v43 = vmul.f32 %v41, %v40
    %v44 = vmul.f32 %v42, %v40
    %v45 = vld [vmem:[%s2] sm:$0xff]
    %v46 = vld [vmem:[%s2 + $0x8] sm:$0xff]
    %v47 = vmul.f32 %v43, %v25
    %v48 = vmul.f32 %v44, %v25
    %v49 = vsub.f32 %v45, %v47
    %v50 = vsub.f32 %v46, %v48
    %52 = vset.pattern.permute.xlu0 0
    %53 = vperm.xlu0 %52, %v43
    %v54 = vpop.permute.xlu0 %53
    %57 = vset.pattern.permute.xlu0 0
    %58 = vperm.xlu0 %57, %v44
    %v59 = vpop.permute.xlu0 %58
    %v61 = vmul.f32 %v54, %v15
    %v62 = vmul.f32 %v59, %v16
    %64 = vset.pattern.permute.xlu0 0
    %65 = vperm.xlu0 %64, %v49
    %v66 = vpop.permute.xlu0 %65
    %69 = vset.pattern.permute.xlu0 0
    %70 = vperm.xlu0 %69, %v50
    %v71 = vpop.permute.xlu0 %70
    %v73 = vadd.f32 %v61, %v66
    %v74 = vadd.f32 %v62, %v71
    %75 = vst [vmem:[#allocation2] sm:$0xff] %v73
    %76 = vst [vmem:[#allocation2 + $0x8] sm:$0xff] %v74
    // Predicated region
    $region14: #{tpu_custom_call.1} parent=1 // pred_check
      _
    $region15: #{tpu_custom_call.1} parent=1 // pred_check_branch
      %78 = sbr.rel (0) target = $region17
    $region16: #{tpu_custom_call.1} parent=1 // pred_region
      %80 = vsyncadd [#allocation3], 0
      %s81 = sshll.u32 [#allocation2], 4
      %s82 = int_to_ptr.vmem [resolvable:$true] %s81
      %s83 = sshll.u32 %s3, 4
      %s84 = int_to_ptr.hbm [resolvable:$true] %s83
      %89 = dma.vmem_to_hbm [thread:$0]  %s82, 256, %s84, [#allocation3], 128, 128, 8
    $region17: #{tpu_custom_call.1} parent=1 // pred_fallthru
      _
    // Predicated region
    $region18: #{tpu_custom_call.1} parent=1 // pred_check
      _
    $region19: #{tpu_custom_call.1} parent=1 // pred_check_branch
      %91 = sbr.rel (0) target = $region21
    $region20: #{tpu_custom_call.1} parent=1 // pred_region
      %93 = dma.done [#allocation3], 256
    $region21: #{tpu_custom_call.1} parent=1 // pred_fallthru
      _
    %94 = vsyncpa [#allocation3], 1

</llo_original>
